<compile_context>
chip_gen: v7x
topology: tpu7x:2x2x1
jax: 0.10.0
libtpu: 0.0.40
codegen_flags: <defaults>
</compile_context>

<pallas_src>
import functools
import math

import jax
import jax.numpy as jnp
from jax import lax
from jax.experimental import pallas as pl
from jax.experimental.pallas import tpu as pltpu


def _round_up(n, m):
    return ((n + m - 1) // m) * m


def _choose_tiles(B, O, F, tm, tn, tk):
    """Clamp tiles to the (padded) problem, keep TPU alignment, keep both v7x cores busy."""
    Bp8 = _round_up(B, 8)
    Op128 = _round_up(O, 128)
    Fp128 = _round_up(F, 128)
    tm = min(tm, Bp8)
    tn = min(tn, Op128)
    tk = min(tk, Fp128)
    # v7x megacore occupancy: with a single batch tile the "parallel" i axis has one
    # block, so make sure the j axis has >= 2 blocks to shard across the 2 TensorCores.
    if Bp8 <= tm and Op128 >= 2 * 128 and Op128 <= tn:
        tn = _round_up(Op128 // 2, 128)
    return tm, tn, tk


def cosine_linear_kernel(row_scale_ref, col_scale_ref, x_ref, w_ref, o_ref):
    """Grid = (B/tm, O/tn, F/tk); feature axis k innermost; accumulate directly in o_ref."""
    k = pl.program_id(2)

    @pl.when(k == 0)
    def _init():
        o_ref[...] = jnp.zeros_like(o_ref)

    # Canonical (tm,tk)@(tk,tn) MXU matmul: bf16 operands (cast once in the wrapper),
    # f32 accumulation straight into the VMEM-resident output tile.
    o_ref[...] += jnp.dot(x_ref[...], w_ref[...], preferred_element_type=jnp.float32)

    @pl.when(k == pl.num_programs(2) - 1)
    def _epilogue():
        # row_scale = sigma / max(||x_b||, 1e-12)   (tm, 1)
        # col_scale = 1 / max(||W_o||, 1e-12)       (1, tn)
        o_ref[...] = o_ref[...] * row_scale_ref[...] * col_scale_ref[...]


def prepare_cosine_linear_weight(weight, *, tn, tk, mxu_dtype=jnp.bfloat16):
    """One-time, cacheable weight prep: f32 reciprocal row norms + transpose/pad/cast.

    Keep the returned tuple around for inference so the full (O,F) weight is not
    re-read / re-padded / re-cast by XLA on every forward call.
    """
    O, F = weight.shape
    Op, Fp = _round_up(O, tn), _round_up(F, tk)
    w32 = weight.astype(jnp.float32)
    # Exact F.normalize semantics, computed from the original f32 weight.
    inv_w = lax.rsqrt(jnp.maximum(jnp.sum(w32 * w32, axis=1), 1e-24))            # (O,)
    col_scale = jnp.pad(inv_w, (0, Op - O)).reshape(1, Op)                        # (1, Op)
    w_t = jnp.pad(w32.T.astype(mxu_dtype), ((0, Fp - F), (0, Op - O)))            # (Fp, Op)
    return w_t, col_scale


def cosine_linear_apply(x, prepared_weight, sigma, *, out_features,
                        tm, tn, tk, mxu_dtype=jnp.bfloat16):
    """out[b, o] = sigma * cosine(x[b], W[o]); x: (B, F); returns f32 (B, out_features)."""
    w_t, col_scale = prepared_weight
    B, F = x.shape
    Fp, Op = w_t.shape
    Bp = _round_up(B, tm)

    # Per-call x prep: f32 reciprocal row norms (exact F.normalize), sigma folded in,
    # then a single bf16 cast + zero pad (padded rows get scale 0 and are sliced away).
    x32 = x.astype(jnp.float32)
    inv_x = lax.rsqrt(jnp.maximum(jnp.sum(x32 * x32, axis=1, keepdims=True), 1e-24))  # (B,1)
    row_scale = jnp.pad(jnp.asarray(sigma, jnp.float32) * inv_x, ((0, Bp - B), (0, 0)))
    x_p = jnp.pad(x.astype(mxu_dtype), ((0, Bp - B), (0, Fp - F)))

    grid = (Bp // tm, Op // tn, Fp // tk)
    out = pl.pallas_call(
        cosine_linear_kernel,
        out_shape=jax.ShapeDtypeStruct((Bp, Op), jnp.float32),
        grid=grid,
        in_specs=[
            pl.BlockSpec((tm, 1), lambda i, j, k: (i, 0)),    # sigma / ||x_b||
            pl.BlockSpec((1, tn), lambda i, j, k: (0, j)),    # 1 / ||W_o||
            pl.BlockSpec((tm, tk), lambda i, j, k: (i, k)),   # x tile (bf16)
            pl.BlockSpec((tk, tn), lambda i, j, k: (k, j)),   # W^T tile (bf16)
        ],
        out_specs=pl.BlockSpec((tm, tn), lambda i, j, k: (i, j)),
        compiler_params=pltpu.CompilerParams(
            dimension_semantics=("parallel", "parallel", "arbitrary")),
    )(row_scale, col_scale, x_p, w_t)

    return out[:B, :out_features]


def cosine_linear(x, weight, sigma, *, mxu_dtype=jnp.bfloat16, tm=512, tn=512, tk=1024):
    """Convenience wrapper = prepare + apply. For inference, hoist the prepare call."""
    B, F = x.shape
    O, F2 = weight.shape
    assert F == F2
    tm, tn, tk = _choose_tiles(B, O, F, tm, tn, tk)
    prepared = prepare_cosine_linear_weight(weight, tn=tn, tk=tk, mxu_dtype=mxu_dtype)
    return cosine_linear_apply(x, prepared, sigma, out_features=O,
                               tm=tm, tn=tn, tk=tk, mxu_dtype=mxu_dtype)


def init_cosine_linear_params(key, in_features, out_features):
    # reset_parameters(): weight ~ U(-stdv, stdv), stdv = 1/sqrt(in_features)
    stdv = 1.0 / math.sqrt(in_features)
    return jax.random.uniform(key, (out_features, in_features),
                              dtype=jnp.float32, minval=-stdv, maxval=stdv)


def reference(x, weight, sigma):
    """Faithful f32 reference for the PyTorch forward()."""
    eps = 1e-12
    xn = x / jnp.maximum(jnp.linalg.norm(x, axis=1, keepdims=True), eps)
    wn = weight / jnp.maximum(jnp.linalg.norm(weight, axis=1, keepdims=True), eps)
    return sigma * jnp.dot(xn, wn.T, precision=lax.Precision.HIGHEST)


def emulated_kernel_math(x, weight, sigma, mxu_dtype=jnp.bfloat16):
    """Pure-XLA version of the exact kernel math (same operand dtype, f32 norms/accum).

    Used to check the kernel's grid/accumulation/epilogue structure with a tight
    tolerance, independent of the bf16 operand rounding it shares with the kernel.
    """
    inv_x = lax.rsqrt(jnp.maximum(jnp.sum(x.astype(jnp.float32) ** 2, axis=1,
                                          keepdims=True), 1e-24))
    inv_w = lax.rsqrt(jnp.maximum(jnp.sum(weight.astype(jnp.float32) ** 2, axis=1,
                                          keepdims=True), 1e-24))
    raw = jnp.dot(x.astype(mxu_dtype), weight.astype(mxu_dtype).T,
                  preferred_element_type=jnp.float32)
    return (jnp.float32(sigma) * inv_x) * raw * inv_w.T


if __name__ == "__main__":
    scale = "fixed_16"
    sigma_type, sigma_init = scale.split("_")
    assert sigma_type == "fixed"
    sigma = float(sigma_init)   # sigma = 16.0 (fixed, not a Parameter)

    key = jax.random.PRNGKey(0)
    k_w, k_x, k_w2, k_x2 = jax.random.split(key, 4)

    # --- Test A: module-like small shapes (single-tile grid after padding) ---
    in_features, out_features, batch = 32, 16, 8
    w_a = init_cosine_linear_params(k_w, in_features, out_features)
    x_a = jax.random.normal(k_x, (batch, in_features), dtype=jnp.float32)

    out_a = jax.block_until_ready(cosine_linear(x_a, w_a, sigma))
    assert out_a.shape == (batch, out_features)
    assert out_a.dtype == jnp.float32
    # vs true f32 reference: bf16 operand rounding bounds |err| well under sigma * 2^-8.
    assert jnp.allclose(out_a, reference(x_a, w_a, sigma), atol=1e-1, rtol=1e-2)
    # vs bf16-emulated math: tight structural check (padding / epilogue / scaling exact).
    assert jnp.allclose(out_a, emulated_kernel_math(x_a, w_a, sigma), atol=1e-3)

    # --- Test B: multi-tile (2,2,2) grid exercising K accumulation into the resident
    #     output tile, the fused epilogue per (i,j), and the pre-transposed weight path.
    B2, F2, O2 = 16, 256, 256
    w_b = init_cosine_linear_params(k_w2, F2, O2)
    x_b = jax.random.normal(k_x2, (B2, F2), dtype=jnp.float32)

    out_b = jax.block_until_ready(
        cosine_linear(x_b, w_b, sigma, tm=8, tn=128, tk=128))
    assert out_b.shape == (B2, O2)
    assert jnp.allclose(out_b, reference(x_b, w_b, sigma), atol=1e-1, rtol=1e-2)
    assert jnp.allclose(out_b, emulated_kernel_math(x_b, w_b, sigma), atol=1e-3)

    print("KERNEL_OK")
</pallas_src>

<mosaic_0001>
module attributes {stable_mosaic.version = 11 : i64} {
  func.func @cosine_linear_kernel(%arg0: i32, %arg1: i32, %arg2: i32, %arg3: memref<8x1xf32, #tpu.memory_space<vmem>>, %arg4: memref<1x128xf32, #tpu.memory_space<vmem>>, %arg5: memref<8x128xbf16, #tpu.memory_space<vmem>>, %arg6: memref<128x128xbf16, #tpu.memory_space<vmem>>, %arg7: memref<8x128xf32, #tpu.memory_space<vmem>>) attributes {dimension_semantics = [#tpu.dimension_semantics<parallel>, #tpu.dimension_semantics<parallel>, #tpu.dimension_semantics<arbitrary>], iteration_bounds = array<i64: 1, 1, 1>, scalar_prefetch = 0 : i64, scratch_operands = 0 : i64, tpu.core_type = #tpu.core_type<tc>, window_params = [{transform_indices = @transform_0, window_bounds = array<i64: 8, 1>}, {transform_indices = @transform_1, window_bounds = array<i64: 1, 128>}, {transform_indices = @transform_2, window_bounds = array<i64: 8, 128>}, {transform_indices = @transform_3, window_bounds = array<i64: 128, 128>}, {transform_indices = @transform_4, window_bounds = array<i64: 8, 128>}]} {
    %c0_i32 = arith.constant 0 : i32
    %0 = arith.cmpi eq, %arg2, %c0_i32 : i32
    %1 = arith.extui %0 : i1 to i32
    %c0_i32_0 = arith.constant 0 : i32
    %2 = arith.cmpi ne, %1, %c0_i32_0 : i32
    scf.if %2 {
      %cst_10 = arith.constant 0.000000e+00 : f32
      %12 = vector.broadcast %cst_10 : f32 to vector<8x128xf32>
      %c0_11 = arith.constant 0 : index
      %c0_12 = arith.constant 0 : index
      %13 = vector.load %arg7[%c0_11, %c0_12] : memref<8x128xf32, #tpu.memory_space<vmem>>, vector<8x128xf32>
      tpu.vector_store %arg7[%c0_11, %c0_12], %12 {strides = array<i32>} : memref<8x128xf32, #tpu.memory_space<vmem>>, vector<8x128xf32>,
    } else {
    }
    %c0 = arith.constant 0 : index
    %c0_1 = arith.constant 0 : index
    %3 = vector.load %arg7[%c0, %c0_1] : memref<8x128xf32, #tpu.memory_space<vmem>>, vector<8x128xf32>
    %c0_2 = arith.constant 0 : index
    %c0_3 = arith.constant 0 : index
    %4 = vector.load %arg5[%c0_2, %c0_3] : memref<8x128xbf16, #tpu.memory_space<vmem>>, vector<8x128xbf16>
    %c0_4 = arith.constant 0 : index
    %c0_5 = arith.constant 0 : index
    %5 = vector.load %arg6[%c0_4, %c0_5] : memref<128x128xbf16, #tpu.memory_space<vmem>>, vector<128x128xbf16>
    %cst = arith.constant dense<0.000000e+00> : vector<8x128xf32>
    %6 = tpu.matmul %4, %5, %cst {dimension_numbers = #tpu.dot_dimension_numbers<[1], [0], [0], [1], [0, 0, 1, 1], [], []>} : vector<8x128xbf16>, vector<128x128xbf16>, vector<8x128xf32> -> vector<8x128xf32>
    %7 = arith.addf %3, %6 : vector<8x128xf32>
    %c0_6 = arith.constant 0 : index
    %c0_7 = arith.constant 0 : index
    %8 = vector.load %arg7[%c0_6, %c0_7] : memref<8x128xf32, #tpu.memory_space<vmem>>, vector<8x128xf32>
    tpu.vector_store %arg7[%c0_6, %c0_7], %7 {strides = array<i32>} : memref<8x128xf32, #tpu.memory_space<vmem>>, vector<8x128xf32>,
    %c0_i32_8 = arith.constant 0 : i32
    %9 = arith.cmpi eq, %arg2, %c0_i32_8 : i32
    %10 = arith.extui %9 : i1 to i32
    %c0_i32_9 = arith.constant 0 : i32
    %11 = arith.cmpi ne, %10, %c0_i32_9 : i32
    scf.if %11 {
      %c0_10 = arith.constant 0 : index
      %c0_11 = arith.constant 0 : index
      %12 = vector.load %arg7[%c0_10, %c0_11] : memref<8x128xf32, #tpu.memory_space<vmem>>, vector<8x128xf32>
      %c0_12 = arith.constant 0 : index
      %c0_13 = arith.constant 0 : index
      %13 = vector.load %arg3[%c0_12, %c0_13] : memref<8x1xf32, #tpu.memory_space<vmem>>, vector<8x1xf32>
      %14 = vector.broadcast %13 : vector<8x1xf32> to vector<8x128xf32>
      %15 = arith.mulf %12, %14 : vector<8x128xf32>
      %c0_14 = arith.constant 0 : index
      %c0_15 = arith.constant 0 : index
      %16 = vector.load %arg4[%c0_14, %c0_15] : memref<1x128xf32, #tpu.memory_space<vmem>>, vector<1x128xf32>
      %17 = vector.broadcast %16 : vector<1x128xf32> to vector<8x128xf32>
      %18 = arith.mulf %15, %17 : vector<8x128xf32>
      %c0_16 = arith.constant 0 : index
      %c0_17 = arith.constant 0 : index
      %19 = vector.load %arg7[%c0_16, %c0_17] : memref<8x128xf32, #tpu.memory_space<vmem>>, vector<8x128xf32>
      tpu.vector_store %arg7[%c0_16, %c0_17], %18 {strides = array<i32>} : memref<8x128xf32, #tpu.memory_space<vmem>>, vector<8x128xf32>,
    } else {
    }
    return
  }
  func.func @transform_0(%arg0: i32, %arg1: i32, %arg2: i32) -> (i32, i32) {
    %c0_i32 = arith.constant 0 : i32
    %c0_i32_0 = arith.constant 0 : i32
    return %arg0, %c0_i32 : i32, i32
  }
  func.func @transform_1(%arg0: i32, %arg1: i32, %arg2: i32) -> (i32, i32) {
    %c0_i32 = arith.constant 0 : i32
    %c0_i32_0 = arith.constant 0 : i32
    return %c0_i32, %arg1 : i32, i32
  }
  func.func @transform_2(%arg0: i32, %arg1: i32, %arg2: i32) -> (i32, i32) {
    %c0_i32 = arith.constant 0 : i32
    return %arg0, %arg2 : i32, i32
  }
  func.func @transform_3(%arg0: i32, %arg1: i32, %arg2: i32) -> (i32, i32) {
    %c0_i32 = arith.constant 0 : i32
    return %arg2, %arg1 : i32, i32
  }
  func.func @transform_4(%arg0: i32, %arg1: i32, %arg2: i32) -> (i32, i32) {
    %c0_i32 = arith.constant 0 : i32
    return %arg0, %arg1 : i32, i32
  }
}

</mosaic_0001>

<llo_original>
// kernel: tpu_custom_call.1
$region0: #{tpu_custom_call.1}
  #allocation0 [shape = 'u32[]', space=smem, size = 0x4, offset = 0x4, fixed_abs, tag = 'smem constant byte address 0x4 - core index']
  #allocation1 [shape = 'u32[144,128]{1,0:T(1,128)}', space=vmem, size = 0x12000, scoped, tag = 'internal scratch']
  %s0 = inlined_call_operand.vmem [shape: f32[8,1], index: 0, kind: input, shape index: {}]
  %s1 = inlined_call_operand.vmem [shape: f32[1,128], index: 1, kind: input, shape index: {}]
  %s2 = inlined_call_operand.vmem [shape: bf16[8,128], index: 2, kind: input, shape index: {}]
  %s3 = inlined_call_operand.hbm [shape: bf16[128,128], index: 3, kind: input, shape index: {}]
  %s4 = inlined_call_operand.hbm [shape: f32[8,128], index: 4, kind: output, shape index: {}]
  %s5 = sld [smem:[#allocation0]]
  $region38: #{tpu_custom_call.1} parent=0
    _
  %s7 = ssub.s32 1, %s5
  %s8 = scalar_select 0, %s7, %s5
  $region1: #{tpu_custom_call.1} parent=0
    #allocation2 [shape = 'u8[32768]{0}', space=vmem, size = 0x8000, scoped, tag = 'input window, operand 3, single buffered']
    #allocation3 [shape = 's32[1]{0}', space=sflag, size = 0x4, scoped, tag = 'scoped memory for tpu_custom_call.1']
    #allocation4 [shape = 's32[1]{0}', space=sflag, size = 0x4, scoped, tag = 'scoped memory for tpu_custom_call.1']
    #allocation5 [shape = 'u8[4096]{0}', space=vmem, size = 0x1000, scoped, tag = 'output window, operand 0, single buffered']
    %9 = vsyncpa [#allocation3], 0
    %10 = vsyncpa [#allocation4], 0
    // Predicated region
    $region2: #{tpu_custom_call.1} parent=1 // pred_check
      _
    $region3: #{tpu_custom_call.1} parent=1 // pred_check_branch
      %12 = sbr.rel (0) target = $region5
    $region4: #{tpu_custom_call.1} parent=1 // pred_region
      _
    $region5: #{tpu_custom_call.1} parent=1 // pred_fallthru
      _
    // Predicated region
    $region6: #{tpu_custom_call.1} parent=1 // pred_check
      _
    $region7: #{tpu_custom_call.1} parent=1 // pred_check_branch
      %14 = sbr.rel (0) target = $region9
    $region8: #{tpu_custom_call.1} parent=1 // pred_region
      _
    $region9: #{tpu_custom_call.1} parent=1 // pred_fallthru
      _
    // Predicated region
    $region10: #{tpu_custom_call.1} parent=1 // pred_check
      _
    $region11: #{tpu_custom_call.1} parent=1 // pred_check_branch
      %16 = sbr.rel (0) target = $region13
    $region12: #{tpu_custom_call.1} parent=1 // pred_region
      _
    $region13: #{tpu_custom_call.1} parent=1 // pred_fallthru
      _
    // Predicated region
    $region14: #{tpu_custom_call.1} parent=1 // pred_check
      _
    $region15: #{tpu_custom_call.1} parent=1 // pred_check_branch
      %18 = sbr.rel (0) target = $region17
    $region16: #{tpu_custom_call.1} parent=1 // pred_region
      %s20 = ssub.s32 1024, 1024
      %21 = vsyncadd [#allocation3], %s20
      %s22 = sshll.u32 [#allocation2], 4
      %s23 = int_to_ptr.vmem [resolvable:$true] %s22
      %28 = dma.hbm_to_vmem [thread:$0]  %s3, 1024, %s23, [#allocation3], 64, 64, 4
    $region17: #{tpu_custom_call.1} parent=1 // pred_fallthru
      _
    // Predicated region
    $region18: #{tpu_custom_call.1} parent=1 // pred_check
      _
    $region19: #{tpu_custom_call.1} parent=1 // pred_check_branch
      %30 = sbr.rel (0) target = $region21
    $region20: #{tpu_custom_call.1} parent=1 // pred_region
      %31 = dma.done [#allocation3], 1024
    $region21: #{tpu_custom_call.1} parent=1 // pred_fallthru
      _
    %p33 = scmp.eq.s32.totalorder 0, 0
    // Predicated region
    $region22: #{tpu_custom_call.1} parent=1 // pred_check
      %p34 = pneg %p33
    $region23: #{tpu_custom_call.1} parent=1 // pred_check_branch
      %36 = sbr.rel (%p34) target = $region25
    $region24: #{tpu_custom_call.1} parent=1 // pred_region
      %37 = vst [vmem:[#allocation5] sm:$0xff] 0.0
    $region25: #{tpu_custom_call.1} parent=1 // pred_fallthru
      _
    %v38 = vld [vmem:[#allocation5] sm:$0xff]
    %v39 = vld [vmem:[%s2] sm:$0xf]
    %v40 = vld [vmem:[#allocation2] sm:$0xf]
    %v41 = vld [vmem:[#allocation2 + $0x4] sm:$0xf]
    %v42 = vld [vmem:[#allocation2 + $0x8] sm:$0xf]
    %v43 = vld [vmem:[#allocation2 + $0xc] sm:$0xf]
    %v44 = vld [vmem:[#allocation2 + $0x10] sm:$0xf]
    %v45 = vld [vmem:[#allocation2 + $0x14] sm:$0xf]
    %v46 = vld [vmem:[#allocation2 + $0x18] sm:$0xf]
    %v47 = vld [vmem:[#allocation2 + $0x1c] sm:$0xf]
    %v48 = vld [vmem:[#allocation2 + $0x20] sm:$0xf]
    %v49 = vld [vmem:[#allocation2 + $0x24] sm:$0xf]
    %v50 = vld [vmem:[#allocation2 + $0x28] sm:$0xf]
    %v51 = vld [vmem:[#allocation2 + $0x2c] sm:$0xf]
    %v52 = vld [vmem:[#allocation2 + $0x30] sm:$0xf]
    %v53 = vld [vmem:[#allocation2 + $0x34] sm:$0xf]
    %v54 = vld [vmem:[#allocation2 + $0x38] sm:$0xf]
    %v55 = vld [vmem:[#allocation2 + $0x3c] sm:$0xf]
    %v72 = vunpack.c.l.b16 %v40
    %v73 = vunpack.c.l.b16 %v41
    %v74 = vunpack.c.l.b16 %v42
    %v75 = vunpack.c.l.b16 %v43
    %v76 = vunpack.c.l.b16 %v44
    %v77 = vunpack.c.l.b16 %v45
    %v78 = vunpack.c.l.b16 %v46
    %v79 = vunpack.c.l.b16 %v47
    %v80 = vunpack.c.l.b16 %v48
    %v81 = vunpack.c.l.b16 %v49
    %v82 = vunpack.c.l.b16 %v50
    %v83 = vunpack.c.l.b16 %v51
    %v84 = vunpack.c.l.b16 %v52
    %v85 = vunpack.c.l.b16 %v53
    %v86 = vunpack.c.l.b16 %v54
    %v87 = vunpack.c.l.b16 %v55
    %v88 = vpack.c.b16 %v73, %v72
    %v89 = vpack.c.b16 %v75, %v74
    %v90 = vpack.c.b16 %v77, %v76
    %v91 = vpack.c.b16 %v79, %v78
    %v92 = vpack.c.b16 %v81, %v80
    %v93 = vpack.c.b16 %v83, %v82
    %v94 = vpack.c.b16 %v85, %v84
    %v95 = vpack.c.b16 %v87, %v86
    %104 = vmatprep.subr.bf16.mxu0 0
    %105 = vmatpush1.bf16.msra.mxu0 %v88
    %106 = vmatprep.subr.bf16.mxu0 0
    %107 = vmatpush1.bf16.msra.mxu0 %v89
    %108 = vmatprep.subr.bf16.mxu0 0
    %109 = vmatpush1.bf16.msra.mxu0 %v90
    %110 = vmatprep.subr.bf16.mxu0 0
    %111 = vmatpush1.bf16.msra.mxu0 %v91
    %112 = vmatprep.subr.bf16.mxu0 0
    %113 = vmatpush1.bf16.msra.mxu0 %v92
    %114 = vmatprep.subr.bf16.mxu0 0
    %115 = vmatpush1.bf16.msra.mxu0 %v93
    %116 = vmatprep.subr.bf16.mxu0 0
    %117 = vmatpush1.bf16.msra.mxu0 %v94
    %118 = vmatprep.subr.bf16.mxu0 0
    %119 = vmatpush1.bf16.msra.mxu0 %v95
    %120 = vmatprep.subr.bf16.mxu0 0
    %121 = vmatpush1.bf16.msra.mxu0 0
    %122 = vmatprep.subr.bf16.mxu0 0
    %123 = vmatpush1.bf16.msra.mxu0 0
    %124 = vmatprep.subr.bf16.mxu0 0
    %125 = vmatpush1.bf16.msra.mxu0 0
    %126 = vmatprep.subr.bf16.mxu0 0
    %127 = vmatpush1.bf16.msra.mxu0 0
    %128 = vmatprep.subr.bf16.mxu0 0
    %129 = vmatpush1.bf16.msra.mxu0 0
    %130 = vmatprep.subr.bf16.mxu0 0
    %131 = vmatpush1.bf16.msra.mxu0 0
    %132 = vmatprep.subr.bf16.mxu0 0
    %133 = vmatpush1.bf16.msra.mxu0 0
    %134 = vmatprep.subr.bf16.mxu0 0
    %135 = vmatpush1.bf16.msra.mxu0 0
    %136 = vmatprep.mubr.bf16.mxu0 0
    %137 = vmatmul.mubr.bf16.gmra.mrb[0].mxu0 %v39
    %v138 = vpop.f32.mrb[0].mxu0
    %v139 = vadd.f32 0.0, %v138
    %v140 = vpop.f32.mrb[0].mxu0
    %v141 = vpop.f32.mrb[0].mxu0
    %v142 = vpop.f32.mrb[0].mxu0
    %143 = vdwg.mxu0
    %v144 = vadd.f32 %v38, %v139
    %145 = vst [vmem:[#allocation5] sm:$0xff] %v144
    // Predicated region
    $region26: #{tpu_custom_call.1} parent=1 // pred_check
      %p146 = pneg %p33
    $region27: #{tpu_custom_call.1} parent=1 // pred_check_branch
      %148 = sbr.rel (%p146) target = $region29
    $region28: #{tpu_custom_call.1} parent=1 // pred_region
      %v149 = vld [vmem:[#allocation5] sm:$0xff]
      %v150 = vld [vmem:[%s0] sm:$0xff]
      %152 = vset.pattern.permute.xlu0 0
      %153 = vperm.xlu0 %152, %v150
      %v154 = vpop.permute.xlu0 %153
      %v156 = vmul.f32 %v149, %v154
      %v157 = vld [vmem:[%s1] sm:$0x1]
      %v159 = vlaneseq
      %v160 = vshrl.u32 %v159, 7
      %v161 = vsub.s32 0, %v160
      %v162 = vrot.slane %v157, %v161
      %v164 = vmul.f32 %v156, %v162
      %165 = vst [vmem:[#allocation5] sm:$0xff] %v164
    $region29: #{tpu_custom_call.1} parent=1 // pred_fallthru
      _
    // Predicated region
    $region30: #{tpu_custom_call.1} parent=1 // pred_check
      _
    $region31: #{tpu_custom_call.1} parent=1 // pred_check_branch
      %167 = sbr.rel (0) target = $region33
    $region32: #{tpu_custom_call.1} parent=1 // pred_region
      %s169 = ssub.s32 128, 128
      %170 = vsyncadd [#allocation4], %s169
      %s172 = sshll.u32 [#allocation5], 4
      %s173 = int_to_ptr.vmem [resolvable:$true] %s172
      %175 = dma.vmem_to_hbm [thread:$0]  %s173, 128, %s4, [#allocation4]
    $region33: #{tpu_custom_call.1} parent=1 // pred_fallthru
      _
    // Predicated region
    $region34: #{tpu_custom_call.1} parent=1 // pred_check
      _
    $region35: #{tpu_custom_call.1} parent=1 // pred_check_branch
      %177 = sbr.rel (0) target = $region37
    $region36: #{tpu_custom_call.1} parent=1 // pred_region
      %178 = dma.done [#allocation4], 128
    $region37: #{tpu_custom_call.1} parent=1 // pred_fallthru
      _
    %179 = vsyncpa [#allocation3], 1
    %180 = vsyncpa [#allocation4], 1

</llo_original>
